<compile_context>
chip_gen: v7x
topology: tpu7x:2x2x1
jax: 0.10.0
libtpu: 0.0.40
codegen_flags: <defaults>
</compile_context>

<pallas_src>
import jax
import jax.numpy as jnp
from jax import lax
from jax.experimental import pallas as pl
from jax.experimental.pallas import tpu as pltpu

INPUT_SIZE = 1
HIDDEN_SIZE = 16
NUM_CLASSES = 5

_SUBLANE = 8     # f32 sublane count
_LANE = 128      # lane width


def lstm_dense_kernel(xproj_ref, whh_t_ref, wd_t_ref, bd_ref, out_ref):
    # xproj_ref: (T, Bp, 4H)  precomputed x @ W_ih^T + b_ih + b_hh (time-major)
    # whh_t_ref: (H, 4H)      W_hh transposed
    # wd_t_ref:  (H, Cp)      dense weight transposed, classes padded to 128
    # bd_ref:    (1, Cp)      dense bias, padded
    # out_ref:   (Bp, Cp)
    T, B, G = xproj_ref.shape
    H = whh_t_ref.shape[0]

    whh_t = whh_t_ref[...]

    # Static lane mask: columns [2H, 3H) are the tanh gate (g); the rest
    # (i, f, o) use sigmoid(x) = 0.5 * tanh(0.5 * x) + 0.5.
    col = lax.broadcasted_iota(jnp.int32, (B, G), 1)
    is_g = (col >= 2 * H) & (col < 3 * H)
    pre_scale = jnp.where(is_g, 1.0, 0.5).astype(jnp.float32)    # mul before tanh
    post_scale = pre_scale                                       # mul after tanh
    post_shift = jnp.where(is_g, 0.0, 0.5).astype(jnp.float32)   # add after tanh

    def step(t, carry):
        h, c = carry
        # gates: (B, 4H) — one small MXU matmul + one add per serial step.
        gates = xproj_ref[t] + jnp.dot(h, whh_t, preferred_element_type=jnp.float32)
        # Single full-tile tanh covering all four gates.
        act = jnp.tanh(gates * pre_scale) * post_scale + post_shift
        i_g = act[:, 0 * H:1 * H]
        f_g = act[:, 1 * H:2 * H]
        g_g = act[:, 2 * H:3 * H]
        o_g = act[:, 3 * H:4 * H]
        c_new = f_g * c + i_g * g_g
        h_new = o_g * jnp.tanh(c_new)
        return (h_new, c_new)

    h0 = jnp.zeros((B, H), jnp.float32)
    c0 = jnp.zeros((B, H), jnp.float32)
    # T is static -> fully unroll the recurrence for scheduler visibility.
    h_T, _ = lax.fori_loop(0, T, step, (h0, c0), unroll=True)

    # Dense head on the padded (lane-dense) class dim; unmasked full-tile store.
    out_ref[...] = (
        jnp.dot(h_T, wd_t_ref[...], preferred_element_type=jnp.float32) + bd_ref[...]
    )


def init_params(key):
    # PyTorch default init ranges; we only need deterministic right-shaped params.
    k = jax.random.split(key, 6)
    H, I, C = HIDDEN_SIZE, INPUT_SIZE, NUM_CLASSES
    s = 1.0 / jnp.sqrt(H)
    w_ih = jax.random.uniform(k[0], (4 * H, I), jnp.float32, -s, s)
    w_hh = jax.random.uniform(k[1], (4 * H, H), jnp.float32, -s, s)
    b_ih = jax.random.uniform(k[2], (4 * H,), jnp.float32, -s, s)
    b_hh = jax.random.uniform(k[3], (4 * H,), jnp.float32, -s, s)
    w_d = jax.random.uniform(k[4], (C, H), jnp.float32, -s, s)
    b_d = jax.random.uniform(k[5], (C,), jnp.float32, -s, s)
    return dict(w_ih=w_ih, w_hh=w_hh, b_ih=b_ih, b_hh=b_hh, w_d=w_d, b_d=b_d)


def rnn_forward(x, params):
    """x: (B, T, I) float32 (batch_first, like the PyTorch module)."""
    B, T, I = x.shape
    H, C = HIDDEN_SIZE, NUM_CLASSES
    B_pad = max(_SUBLANE, ((B + _SUBLANE - 1) // _SUBLANE) * _SUBLANE)
    C_pad = _LANE

    # Hoist the input projection + fused biases out of the recurrence (XLA).
    # x_proj: (B, T, 4H)
    x_proj = jnp.einsum("bti,gi->btg", x, params["w_ih"]) + (
        params["b_ih"] + params["b_hh"]
    )
    # Pad batch to fill sublanes; padded rows are dead work, sliced off below.
    x_proj = jnp.pad(x_proj, ((0, B_pad - B), (0, 0), (0, 0)))
    x_proj_tm = jnp.transpose(x_proj, (1, 0, 2))              # (T, Bp, 4H)

    whh_t = jnp.transpose(params["w_hh"], (1, 0))             # (H, 4H)
    # Pad the class dim to a full 128-lane tile for an unmasked output store.
    wd_t = jnp.transpose(params["w_d"], (1, 0))               # (H, C)
    wd_t_pad = jnp.pad(wd_t, ((0, 0), (0, C_pad - C)))        # (H, Cp)
    bd_pad = jnp.pad(params["b_d"], ((0, C_pad - C),)).reshape(1, C_pad)

    vmem = pl.BlockSpec(memory_space=pltpu.MemorySpace.VMEM)
    out_pad = pl.pallas_call(
        lstm_dense_kernel,
        out_shape=jax.ShapeDtypeStruct((B_pad, C_pad), jnp.float32),
        in_specs=[vmem] * 4,
        out_specs=vmem,
    )(x_proj_tm, whh_t, wd_t_pad, bd_pad)
    return out_pad[:B, :C]


def rnn_forward_ref(x, params):
    """Pure-JAX reference of the same forward pass (for sanity checking)."""
    H = HIDDEN_SIZE
    B = x.shape[0]
    wih_t = params["w_ih"].T
    whh_t = params["w_hh"].T
    b = params["b_ih"] + params["b_hh"]

    def step(carry, x_t):
        h, c = carry
        gates = x_t @ wih_t + h @ whh_t + b
        i = jax.nn.sigmoid(gates[:, 0 * H:1 * H])
        f = jax.nn.sigmoid(gates[:, 1 * H:2 * H])
        g = jnp.tanh(gates[:, 2 * H:3 * H])
        o = jax.nn.sigmoid(gates[:, 3 * H:4 * H])
        c = f * c + i * g
        h = o * jnp.tanh(c)
        return (h, c), None

    h0 = jnp.zeros((B, H), jnp.float32)
    c0 = jnp.zeros((B, H), jnp.float32)
    (h_T, _), _ = lax.scan(step, (h0, c0), jnp.transpose(x, (1, 0, 2)))
    return h_T @ params["w_d"].T + params["b_d"]


if __name__ == "__main__":
    key = jax.random.PRNGKey(0)
    pkey, xkey = jax.random.split(key)
    params = init_params(pkey)

    B, T = 2, 8
    x = jax.random.normal(xkey, (B, T, INPUT_SIZE), jnp.float32)

    out = rnn_forward(x, params)
    jax.block_until_ready(out)

    ref = rnn_forward_ref(x, params)
    assert out.shape == (B, NUM_CLASSES)
    assert jnp.allclose(out, ref, atol=1e-2, rtol=1e-2)

    print("KERNEL_OK")
</pallas_src>

<mosaic_0001>
module attributes {stable_mosaic.version = 11 : i64} {
  func.func @lstm_dense_kernel(%arg0: memref<8x8x64xf32, #tpu.memory_space<vmem>>, %arg1: memref<16x64xf32, #tpu.memory_space<vmem>>, %arg2: memref<16x128xf32, #tpu.memory_space<vmem>>, %arg3: memref<1x128xf32, #tpu.memory_space<vmem>>, %arg4: memref<8x128xf32, #tpu.memory_space<vmem>>) attributes {dimension_semantics = [], scalar_prefetch = 0 : i64, scratch_operands = 0 : i64, tpu.core_type = #tpu.core_type<tc>} {
    %c0 = arith.constant 0 : index
    %c0_0 = arith.constant 0 : index
    %0 = vector.load %arg1[%c0, %c0_0] : memref<16x64xf32, #tpu.memory_space<vmem>>, vector<16x64xf32>
    %1 = tpu.iota {dimensions = array<i32: 1>} : vector<8x64xi32>
    %c32_i32 = arith.constant 32 : i32
    %2 = vector.broadcast %c32_i32 : i32 to vector<8x64xi32>
    %3 = arith.cmpi sge, %1, %2 : vector<8x64xi32>
    %c48_i32 = arith.constant 48 : i32
    %4 = vector.broadcast %c48_i32 : i32 to vector<8x64xi32>
    %5 = arith.cmpi slt, %1, %4 : vector<8x64xi32>
    %6 = arith.andi %3, %5 : vector<8x64xi1>
    %cst = arith.constant 1.000000e+00 : f32
    %cst_1 = arith.constant 5.000000e-01 : f32
    %7 = vector.broadcast %cst : f32 to vector<8x64xf32>
    %8 = vector.broadcast %cst_1 : f32 to vector<8x64xf32>
    %9 = arith.select %6, %7, %8 : vector<8x64xi1>, vector<8x64xf32>
    %cst_2 = arith.constant 0.000000e+00 : f32
    %cst_3 = arith.constant 5.000000e-01 : f32
    %10 = vector.broadcast %cst_2 : f32 to vector<8x64xf32>
    %11 = vector.broadcast %cst_3 : f32 to vector<8x64xf32>
    %12 = arith.select %6, %10, %11 : vector<8x64xi1>, vector<8x64xf32>
    %cst_4 = arith.constant 0.000000e+00 : f32
    %13 = vector.broadcast %cst_4 : f32 to vector<8x16xf32>
    %cst_5 = arith.constant 0.000000e+00 : f32
    %14 = vector.broadcast %cst_5 : f32 to vector<8x16xf32>
    %c0_i32 = arith.constant 0 : i32
    %15 = arith.index_cast %c0_i32 : i32 to index
    %c0_6 = arith.constant 0 : index
    %c0_7 = arith.constant 0 : index
    %16 = vector.load %arg0[%15, %c0_6, %c0_7] : memref<8x8x64xf32, #tpu.memory_space<vmem>>, vector<1x8x64xf32>
    %17 = vector.shape_cast %16 : vector<1x8x64xf32> to vector<8x64xf32>
    %cst_8 = arith.constant dense<0.000000e+00> : vector<8x64xf32>
    %18 = tpu.matmul %13, %0, %cst_8 {dimension_numbers = #tpu.dot_dimension_numbers<[1], [0], [0], [1], [0, 0, 1, 1], [], []>} : vector<8x16xf32>, vector<16x64xf32>, vector<8x64xf32> -> vector<8x64xf32>
    %19 = arith.addf %17, %18 : vector<8x64xf32>
    %20 = arith.mulf %19, %9 : vector<8x64xf32>
    %21 = math.tanh %20 : vector<8x64xf32>
    %22 = arith.mulf %21, %9 : vector<8x64xf32>
    %23 = arith.addf %22, %12 : vector<8x64xf32>
    %24 = vector.extract_strided_slice %23 {offsets = [0, 0], sizes = [8, 16], strides = [1, 1]} : vector<8x64xf32> to vector<8x16xf32>
    %25 = vector.extract_strided_slice %23 {offsets = [0, 16], sizes = [8, 16], strides = [1, 1]} : vector<8x64xf32> to vector<8x16xf32>
    %26 = vector.extract_strided_slice %23 {offsets = [0, 32], sizes = [8, 16], strides = [1, 1]} : vector<8x64xf32> to vector<8x16xf32>
    %27 = vector.extract_strided_slice %23 {offsets = [0, 48], sizes = [8, 16], strides = [1, 1]} : vector<8x64xf32> to vector<8x16xf32>
    %28 = arith.mulf %25, %14 : vector<8x16xf32>
    %29 = arith.mulf %24, %26 : vector<8x16xf32>
    %30 = arith.addf %28, %29 : vector<8x16xf32>
    %31 = math.tanh %30 : vector<8x16xf32>
    %32 = arith.mulf %27, %31 : vector<8x16xf32>
    %c1_i32 = arith.constant 1 : i32
    %33 = arith.index_cast %c1_i32 : i32 to index
    %c0_9 = arith.constant 0 : index
    %c0_10 = arith.constant 0 : index
    %34 = vector.load %arg0[%33, %c0_9, %c0_10] : memref<8x8x64xf32, #tpu.memory_space<vmem>>, vector<1x8x64xf32>
    %35 = vector.shape_cast %34 : vector<1x8x64xf32> to vector<8x64xf32>
    %cst_11 = arith.constant dense<0.000000e+00> : vector<8x64xf32>
    %36 = tpu.matmul %32, %0, %cst_11 {dimension_numbers = #tpu.dot_dimension_numbers<[1], [0], [0], [1], [0, 0, 1, 1], [], []>} : vector<8x16xf32>, vector<16x64xf32>, vector<8x64xf32> -> vector<8x64xf32>
    %37 = arith.addf %35, %36 : vector<8x64xf32>
    %38 = arith.mulf %37, %9 : vector<8x64xf32>
    %39 = math.tanh %38 : vector<8x64xf32>
    %40 = arith.mulf %39, %9 : vector<8x64xf32>
    %41 = arith.addf %40, %12 : vector<8x64xf32>
    %42 = vector.extract_strided_slice %41 {offsets = [0, 0], sizes = [8, 16], strides = [1, 1]} : vector<8x64xf32> to vector<8x16xf32>
    %43 = vector.extract_strided_slice %41 {offsets = [0, 16], sizes = [8, 16], strides = [1, 1]} : vector<8x64xf32> to vector<8x16xf32>
    %44 = vector.extract_strided_slice %41 {offsets = [0, 32], sizes = [8, 16], strides = [1, 1]} : vector<8x64xf32> to vector<8x16xf32>
    %45 = vector.extract_strided_slice %41 {offsets = [0, 48], sizes = [8, 16], strides = [1, 1]} : vector<8x64xf32> to vector<8x16xf32>
    %46 = arith.mulf %43, %30 : vector<8x16xf32>
    %47 = arith.mulf %42, %44 : vector<8x16xf32>
    %48 = arith.addf %46, %47 : vector<8x16xf32>
    %49 = math.tanh %48 : vector<8x16xf32>
    %50 = arith.mulf %45, %49 : vector<8x16xf32>
    %c2_i32 = arith.constant 2 : i32
    %51 = arith.index_cast %c2_i32 : i32 to index
    %c0_12 = arith.constant 0 : index
    %c0_13 = arith.constant 0 : index
    %52 = vector.load %arg0[%51, %c0_12, %c0_13] : memref<8x8x64xf32, #tpu.memory_space<vmem>>, vector<1x8x64xf32>
    %53 = vector.shape_cast %52 : vector<1x8x64xf32> to vector<8x64xf32>
    %cst_14 = arith.constant dense<0.000000e+00> : vector<8x64xf32>
    %54 = tpu.matmul %50, %0, %cst_14 {dimension_numbers = #tpu.dot_dimension_numbers<[1], [0], [0], [1], [0, 0, 1, 1], [], []>} : vector<8x16xf32>, vector<16x64xf32>, vector<8x64xf32> -> vector<8x64xf32>
    %55 = arith.addf %53, %54 : vector<8x64xf32>
    %56 = arith.mulf %55, %9 : vector<8x64xf32>
    %57 = math.tanh %56 : vector<8x64xf32>
    %58 = arith.mulf %57, %9 : vector<8x64xf32>
    %59 = arith.addf %58, %12 : vector<8x64xf32>
    %60 = vector.extract_strided_slice %59 {offsets = [0, 0], sizes = [8, 16], strides = [1, 1]} : vector<8x64xf32> to vector<8x16xf32>
    %61 = vector.extract_strided_slice %59 {offsets = [0, 16], sizes = [8, 16], strides = [1, 1]} : vector<8x64xf32> to vector<8x16xf32>
    %62 = vector.extract_strided_slice %59 {offsets = [0, 32], sizes = [8, 16], strides = [1, 1]} : vector<8x64xf32> to vector<8x16xf32>
    %63 = vector.extract_strided_slice %59 {offsets = [0, 48], sizes = [8, 16], strides = [1, 1]} : vector<8x64xf32> to vector<8x16xf32>
    %64 = arith.mulf %61, %48 : vector<8x16xf32>
    %65 = arith.mulf %60, %62 : vector<8x16xf32>
    %66 = arith.addf %64, %65 : vector<8x16xf32>
    %67 = math.tanh %66 : vector<8x16xf32>
    %68 = arith.mulf %63, %67 : vector<8x16xf32>
    %c3_i32 = arith.constant 3 : i32
    %69 = arith.index_cast %c3_i32 : i32 to index
    %c0_15 = arith.constant 0 : index
    %c0_16 = arith.constant 0 : index
    %70 = vector.load %arg0[%69, %c0_15, %c0_16] : memref<8x8x64xf32, #tpu.memory_space<vmem>>, vector<1x8x64xf32>
    %71 = vector.shape_cast %70 : vector<1x8x64xf32> to vector<8x64xf32>
    %cst_17 = arith.constant dense<0.000000e+00> : vector<8x64xf32>
    %72 = tpu.matmul %68, %0, %cst_17 {dimension_numbers = #tpu.dot_dimension_numbers<[1], [0], [0], [1], [0, 0, 1, 1], [], []>} : vector<8x16xf32>, vector<16x64xf32>, vector<8x64xf32> -> vector<8x64xf32>
    %73 = arith.addf %71, %72 : vector<8x64xf32>
    %74 = arith.mulf %73, %9 : vector<8x64xf32>
    %75 = math.tanh %74 : vector<8x64xf32>
    %76 = arith.mulf %75, %9 : vector<8x64xf32>
    %77 = arith.addf %76, %12 : vector<8x64xf32>
    %78 = vector.extract_strided_slice %77 {offsets = [0, 0], sizes = [8, 16], strides = [1, 1]} : vector<8x64xf32> to vector<8x16xf32>
    %79 = vector.extract_strided_slice %77 {offsets = [0, 16], sizes = [8, 16], strides = [1, 1]} : vector<8x64xf32> to vector<8x16xf32>
    %80 = vector.extract_strided_slice %77 {offsets = [0, 32], sizes = [8, 16], strides = [1, 1]} : vector<8x64xf32> to vector<8x16xf32>
    %81 = vector.extract_strided_slice %77 {offsets = [0, 48], sizes = [8, 16], strides = [1, 1]} : vector<8x64xf32> to vector<8x16xf32>
    %82 = arith.mulf %79, %66 : vector<8x16xf32>
    %83 = arith.mulf %78, %80 : vector<8x16xf32>
    %84 = arith.addf %82, %83 : vector<8x16xf32>
    %85 = math.tanh %84 : vector<8x16xf32>
    %86 = arith.mulf %81, %85 : vector<8x16xf32>
    %c4_i32 = arith.constant 4 : i32
    %87 = arith.index_cast %c4_i32 : i32 to index
    %c0_18 = arith.constant 0 : index
    %c0_19 = arith.constant 0 : index
    %88 = vector.load %arg0[%87, %c0_18, %c0_19] : memref<8x8x64xf32, #tpu.memory_space<vmem>>, vector<1x8x64xf32>
    %89 = vector.shape_cast %88 : vector<1x8x64xf32> to vector<8x64xf32>
    %cst_20 = arith.constant dense<0.000000e+00> : vector<8x64xf32>
    %90 = tpu.matmul %86, %0, %cst_20 {dimension_numbers = #tpu.dot_dimension_numbers<[1], [0], [0], [1], [0, 0, 1, 1], [], []>} : vector<8x16xf32>, vector<16x64xf32>, vector<8x64xf32> -> vector<8x64xf32>
    %91 = arith.addf %89, %90 : vector<8x64xf32>
    %92 = arith.mulf %91, %9 : vector<8x64xf32>
    %93 = math.tanh %92 : vector<8x64xf32>
    %94 = arith.mulf %93, %9 : vector<8x64xf32>
    %95 = arith.addf %94, %12 : vector<8x64xf32>
    %96 = vector.extract_strided_slice %95 {offsets = [0, 0], sizes = [8, 16], strides = [1, 1]} : vector<8x64xf32> to vector<8x16xf32>
    %97 = vector.extract_strided_slice %95 {offsets = [0, 16], sizes = [8, 16], strides = [1, 1]} : vector<8x64xf32> to vector<8x16xf32>
    %98 = vector.extract_strided_slice %95 {offsets = [0, 32], sizes = [8, 16], strides = [1, 1]} : vector<8x64xf32> to vector<8x16xf32>
    %99 = vector.extract_strided_slice %95 {offsets = [0, 48], sizes = [8, 16], strides = [1, 1]} : vector<8x64xf32> to vector<8x16xf32>
    %100 = arith.mulf %97, %84 : vector<8x16xf32>
    %101 = arith.mulf %96, %98 : vector<8x16xf32>
    %102 = arith.addf %100, %101 : vector<8x16xf32>
    %103 = math.tanh %102 : vector<8x16xf32>
    %104 = arith.mulf %99, %103 : vector<8x16xf32>
    %c5_i32 = arith.constant 5 : i32
    %105 = arith.index_cast %c5_i32 : i32 to index
    %c0_21 = arith.constant 0 : index
    %c0_22 = arith.constant 0 : index
    %106 = vector.load %arg0[%105, %c0_21, %c0_22] : memref<8x8x64xf32, #tpu.memory_space<vmem>>, vector<1x8x64xf32>
    %107 = vector.shape_cast %106 : vector<1x8x64xf32> to vector<8x64xf32>
    %cst_23 = arith.constant dense<0.000000e+00> : vector<8x64xf32>
    %108 = tpu.matmul %104, %0, %cst_23 {dimension_numbers = #tpu.dot_dimension_numbers<[1], [0], [0], [1], [0, 0, 1, 1], [], []>} : vector<8x16xf32>, vector<16x64xf32>, vector<8x64xf32> -> vector<8x64xf32>
    %109 = arith.addf %107, %108 : vector<8x64xf32>
    %110 = arith.mulf %109, %9 : vector<8x64xf32>
    %111 = math.tanh %110 : vector<8x64xf32>
    %112 = arith.mulf %111, %9 : vector<8x64xf32>
    %113 = arith.addf %112, %12 : vector<8x64xf32>
    %114 = vector.extract_strided_slice %113 {offsets = [0, 0], sizes = [8, 16], strides = [1, 1]} : vector<8x64xf32> to vector<8x16xf32>
    %115 = vector.extract_strided_slice %113 {offsets = [0, 16], sizes = [8, 16], strides = [1, 1]} : vector<8x64xf32> to vector<8x16xf32>
    %116 = vector.extract_strided_slice %113 {offsets = [0, 32], sizes = [8, 16], strides = [1, 1]} : vector<8x64xf32> to vector<8x16xf32>
    %117 = vector.extract_strided_slice %113 {offsets = [0, 48], sizes = [8, 16], strides = [1, 1]} : vector<8x64xf32> to vector<8x16xf32>
    %118 = arith.mulf %115, %102 : vector<8x16xf32>
    %119 = arith.mulf %114, %116 : vector<8x16xf32>
    %120 = arith.addf %118, %119 : vector<8x16xf32>
    %121 = math.tanh %120 : vector<8x16xf32>
    %122 = arith.mulf %117, %121 : vector<8x16xf32>
    %c6_i32 = arith.constant 6 : i32
    %123 = arith.index_cast %c6_i32 : i32 to index
    %c0_24 = arith.constant 0 : index
    %c0_25 = arith.constant 0 : index
    %124 = vector.load %arg0[%123, %c0_24, %c0_25] : memref<8x8x64xf32, #tpu.memory_space<vmem>>, vector<1x8x64xf32>
    %125 = vector.shape_cast %124 : vector<1x8x64xf32> to vector<8x64xf32>
    %cst_26 = arith.constant dense<0.000000e+00> : vector<8x64xf32>
    %126 = tpu.matmul %122, %0, %cst_26 {dimension_numbers = #tpu.dot_dimension_numbers<[1], [0], [0], [1], [0, 0, 1, 1], [], []>} : vector<8x16xf32>, vector<16x64xf32>, vector<8x64xf32> -> vector<8x64xf32>
    %127 = arith.addf %125, %126 : vector<8x64xf32>
    %128 = arith.mulf %127, %9 : vector<8x64xf32>
    %129 = math.tanh %128 : vector<8x64xf32>
    %130 = arith.mulf %129, %9 : vector<8x64xf32>
    %131 = arith.addf %130, %12 : vector<8x64xf32>
    %132 = vector.extract_strided_slice %131 {offsets = [0, 0], sizes = [8, 16], strides = [1, 1]} : vector<8x64xf32> to vector<8x16xf32>
    %133 = vector.extract_strided_slice %131 {offsets = [0, 16], sizes = [8, 16], strides = [1, 1]} : vector<8x64xf32> to vector<8x16xf32>
    %134 = vector.extract_strided_slice %131 {offsets = [0, 32], sizes = [8, 16], strides = [1, 1]} : vector<8x64xf32> to vector<8x16xf32>
    %135 = vector.extract_strided_slice %131 {offsets = [0, 48], sizes = [8, 16], strides = [1, 1]} : vector<8x64xf32> to vector<8x16xf32>
    %136 = arith.mulf %133, %120 : vector<8x16xf32>
    %137 = arith.mulf %132, %134 : vector<8x16xf32>
    %138 = arith.addf %136, %137 : vector<8x16xf32>
    %139 = math.tanh %138 : vector<8x16xf32>
    %140 = arith.mulf %135, %139 : vector<8x16xf32>
    %c7_i32 = arith.constant 7 : i32
    %141 = arith.index_cast %c7_i32 : i32 to index
    %c0_27 = arith.constant 0 : index
    %c0_28 = arith.constant 0 : index
    %142 = vector.load %arg0[%141, %c0_27, %c0_28] : memref<8x8x64xf32, #tpu.memory_space<vmem>>, vector<1x8x64xf32>
    %143 = vector.shape_cast %142 : vector<1x8x64xf32> to vector<8x64xf32>
    %cst_29 = arith.constant dense<0.000000e+00> : vector<8x64xf32>
    %144 = tpu.matmul %140, %0, %cst_29 {dimension_numbers = #tpu.dot_dimension_numbers<[1], [0], [0], [1], [0, 0, 1, 1], [], []>} : vector<8x16xf32>, vector<16x64xf32>, vector<8x64xf32> -> vector<8x64xf32>
    %145 = arith.addf %143, %144 : vector<8x64xf32>
    %146 = arith.mulf %145, %9 : vector<8x64xf32>
    %147 = math.tanh %146 : vector<8x64xf32>
    %148 = arith.mulf %147, %9 : vector<8x64xf32>
    %149 = arith.addf %148, %12 : vector<8x64xf32>
    %150 = vector.extract_strided_slice %149 {offsets = [0, 0], sizes = [8, 16], strides = [1, 1]} : vector<8x64xf32> to vector<8x16xf32>
    %151 = vector.extract_strided_slice %149 {offsets = [0, 16], sizes = [8, 16], strides = [1, 1]} : vector<8x64xf32> to vector<8x16xf32>
    %152 = vector.extract_strided_slice %149 {offsets = [0, 32], sizes = [8, 16], strides = [1, 1]} : vector<8x64xf32> to vector<8x16xf32>
    %153 = vector.extract_strided_slice %149 {offsets = [0, 48], sizes = [8, 16], strides = [1, 1]} : vector<8x64xf32> to vector<8x16xf32>
    %154 = arith.mulf %151, %138 : vector<8x16xf32>
    %155 = arith.mulf %150, %152 : vector<8x16xf32>
    %156 = arith.addf %154, %155 : vector<8x16xf32>
    %157 = math.tanh %156 : vector<8x16xf32>
    %158 = arith.mulf %153, %157 : vector<8x16xf32>
    %c8_i32 = arith.constant 8 : i32
    %c0_30 = arith.constant 0 : index
    %c0_31 = arith.constant 0 : index
    %159 = vector.load %arg2[%c0_30, %c0_31] : memref<16x128xf32, #tpu.memory_space<vmem>>, vector<16x128xf32>
    %cst_32 = arith.constant dense<0.000000e+00> : vector<8x128xf32>
    %160 = tpu.matmul %158, %159, %cst_32 {dimension_numbers = #tpu.dot_dimension_numbers<[1], [0], [0], [1], [0, 0, 1, 1], [], []>} : vector<8x16xf32>, vector<16x128xf32>, vector<8x128xf32> -> vector<8x128xf32>
    %c0_33 = arith.constant 0 : index
    %c0_34 = arith.constant 0 : index
    %161 = vector.load %arg3[%c0_33, %c0_34] : memref<1x128xf32, #tpu.memory_space<vmem>>, vector<1x128xf32>
    %162 = vector.broadcast %161 : vector<1x128xf32> to vector<8x128xf32>
    %163 = arith.addf %160, %162 : vector<8x128xf32>
    %c0_35 = arith.constant 0 : index
    %c0_36 = arith.constant 0 : index
    %164 = vector.load %arg4[%c0_35, %c0_36] : memref<8x128xf32, #tpu.memory_space<vmem>>, vector<8x128xf32>
    tpu.vector_store %arg4[%c0_35, %c0_36], %163 {strides = array<i32>} : memref<8x128xf32, #tpu.memory_space<vmem>>, vector<8x128xf32>,
    return
  }
}

</mosaic_0001>

<llo_original>
// kernel: tpu_custom_call.1
$region0: #{tpu_custom_call.1}
  #allocation0 [shape = 'u32[]', space=smem, size = 0x4, offset = 0x4, fixed_abs, tag = 'smem constant byte address 0x4 - core index']
  #allocation1 [shape = 'u32[144,128]{1,0:T(1,128)}', space=vmem, size = 0x12000, scoped, tag = 'internal scratch']
  %s0 = inlined_call_operand.hbm [shape: f32[8,8,64], index: 0, kind: input, shape index: {}]
  %s1 = inlined_call_operand.hbm [shape: f32[16,64], index: 1, kind: input, shape index: {}]
  %s2 = inlined_call_operand.hbm [shape: f32[16,128], index: 2, kind: input, shape index: {}]
  %s3 = inlined_call_operand.vmem [shape: f32[1,128], index: 3, kind: input, shape index: {}]
  %s4 = inlined_call_operand.hbm [shape: f32[8,128], index: 4, kind: output, shape index: {}]
  %s5 = sld [smem:[#allocation0]]
  $region38: #{tpu_custom_call.1} parent=0
    _
  %s7 = ssub.s32 1, %s5
  %s8 = scalar_select 0, %s7, %s5
  $region1: #{tpu_custom_call.1} parent=0
    #allocation2 [shape = 'u8[32768]{0}', space=vmem, size = 0x8000, scoped, tag = 'input window, operand 0, single buffered']
    #allocation3 [shape = 's32[1]{0}', space=sflag, size = 0x4, scoped, tag = 'scoped memory for tpu_custom_call.1']
    #allocation4 [shape = 's32[1]{0}', space=sflag, size = 0x4, scoped, tag = 'scoped memory for tpu_custom_call.1']
    #allocation5 [shape = 'u8[8192]{0}', space=vmem, size = 0x2000, scoped, tag = 'input window, operand 1, single buffered']
    #allocation6 [shape = 's32[1]{0}', space=sflag, size = 0x4, scoped, tag = 'scoped memory for tpu_custom_call.1']
    #allocation7 [shape = 'u8[8192]{0}', space=vmem, size = 0x2000, scoped, tag = 'input window, operand 2, single buffered']
    #allocation8 [shape = 'u8[4096]{0}', space=vmem, size = 0x1000, scoped, tag = 'output window, operand 0, single buffered']
    %9 = vsyncpa [#allocation3], 0
    %10 = vsyncpa [#allocation6], 0
    %11 = vsyncpa [#allocation4], 0
    // Predicated region
    $region2: #{tpu_custom_call.1} parent=1 // pred_check
      _
    $region3: #{tpu_custom_call.1} parent=1 // pred_check_branch
      %13 = sbr.rel (0) target = $region5
    $region4: #{tpu_custom_call.1} parent=1 // pred_region
      %s15 = ssub.s32 1024, 1024
      %16 = vsyncadd [#allocation3], %s15
      %s17 = sshll.u32 [#allocation2], 4
      %s18 = int_to_ptr.vmem [resolvable:$true] %s17
      %23 = dma.hbm_to_vmem [thread:$0]  %s0, 1024, %s18, [#allocation3], 128, 128, 8
    $region5: #{tpu_custom_call.1} parent=1 // pred_fallthru
      _
    // Predicated region
    $region6: #{tpu_custom_call.1} parent=1 // pred_check
      _
    $region7: #{tpu_custom_call.1} parent=1 // pred_check_branch
      %25 = sbr.rel (0) target = $region9
    $region8: #{tpu_custom_call.1} parent=1 // pred_region
      %s27 = ssub.s32 256, 256
      %28 = vsyncadd [#allocation6], %s27
      %s29 = sshll.u32 [#allocation5], 4
      %s30 = int_to_ptr.vmem [resolvable:$true] %s29
      %35 = dma.hbm_to_vmem [thread:$0]  %s1, 256, %s30, [#allocation6], 128, 128, 8
    $region9: #{tpu_custom_call.1} parent=1 // pred_fallthru
      _
    // Predicated region
    $region10: #{tpu_custom_call.1} parent=1 // pred_check
      _
    $region11: #{tpu_custom_call.1} parent=1 // pred_check_branch
      %37 = sbr.rel (0) target = $region13
    $region12: #{tpu_custom_call.1} parent=1 // pred_region
      %s39 = ssub.s32 256, 256
      %40 = vsyncadd [#allocation6], %s39
      %s41 = sshll.u32 [#allocation7], 4
      %s42 = int_to_ptr.vmem [resolvable:$true] %s41
      %47 = dma.hbm_to_vmem [thread:$0]  %s2, 256, %s42, [#allocation6], 128, 128, 8
    $region13: #{tpu_custom_call.1} parent=1 // pred_fallthru
      _
    // Predicated region
    $region14: #{tpu_custom_call.1} parent=1 // pred_check
      _
    $region15: #{tpu_custom_call.1} parent=1 // pred_check_branch
      %49 = sbr.rel (0) target = $region17
    $region16: #{tpu_custom_call.1} parent=1 // pred_region
      _
    $region17: #{tpu_custom_call.1} parent=1 // pred_fallthru
      _
    // Predicated region
    $region18: #{tpu_custom_call.1} parent=1 // pred_check
      _
    $region19: #{tpu_custom_call.1} parent=1 // pred_check_branch
      %51 = sbr.rel (0) target = $region21
    $region20: #{tpu_custom_call.1} parent=1 // pred_region
      %52 = dma.done [#allocation3], 1024
    $region21: #{tpu_custom_call.1} parent=1 // pred_fallthru
      _
    // Predicated region
    $region22: #{tpu_custom_call.1} parent=1 // pred_check
      _
    $region23: #{tpu_custom_call.1} parent=1 // pred_check_branch
      %54 = sbr.rel (0) target = $region25
    $region24: #{tpu_custom_call.1} parent=1 // pred_region
      %55 = dma.done [#allocation6], 256
    $region25: #{tpu_custom_call.1} parent=1 // pred_fallthru
      _
    // Predicated region
    $region26: #{tpu_custom_call.1} parent=1 // pred_check
      _
    $region27: #{tpu_custom_call.1} parent=1 // pred_check_branch
      %57 = sbr.rel (0) target = $region29
    $region28: #{tpu_custom_call.1} parent=1 // pred_region
      %58 = dma.done [#allocation6], 256
    $region29: #{tpu_custom_call.1} parent=1 // pred_fallthru
      _
    %v59 = vld [vmem:[#allocation5] sm:$0xff]
    %v60 = vld [vmem:[#allocation5 + $0x8] sm:$0xff]
    %v61 = vlaneseq
    %v62 = vand.u32 %v61, 127
    %vm63 = vcmp.ge.s32.totalorder %v62, 32
    %vm64 = vcmp.lt.s32.totalorder %v62, 48
    %vm65 = vmand %vm63, %vm64
    %v66 = vsel %vm65, 1.0, 0.5
    %v67 = vsel %vm65, 0.0, 0.5
    %v68 = vld [vmem:[#allocation2] sm:$0xff]
    %vm69 = vcmask 130048
    %v71 = vsel %vm69, 0.0, 0
    %73 = vmatprep.subr.mxu0 0.0
    %74 = vmatpush1.msra.mxu0 %v59
    %75 = vmatprep.subr.mxu0 0.0
    %76 = vmatpush1.msra.mxu0 %v60
    %77 = vmatprep.subr.mxu0 0.0
    %78 = vmatpush1.msra.mxu0 0.0
    %79 = vmatprep.subr.mxu0 0.0
    %80 = vmatpush1.msra.mxu0 0.0
    %81 = vmatprep.subr.mxu0 0.0
    %82 = vmatpush1.msra.mxu0 0.0
    %83 = vmatprep.subr.mxu0 0.0
    %84 = vmatpush1.msra.mxu0 0.0
    %85 = vmatprep.subr.mxu0 0.0
    %86 = vmatpush1.msra.mxu0 0.0
    %87 = vmatprep.subr.mxu0 0.0
    %88 = vmatpush1.msra.mxu0 0.0
    %89 = vmatprep.subr.mxu0 0.0
    %90 = vmatpush1.msra.mxu0 0.0
    %91 = vmatprep.subr.mxu0 0.0
    %92 = vmatpush1.msra.mxu0 0.0
    %93 = vmatprep.subr.mxu0 0.0
    %94 = vmatpush1.msra.mxu0 0.0
    %95 = vmatprep.subr.mxu0 0.0
    %96 = vmatpush1.msra.mxu0 0.0
    %97 = vmatprep.subr.mxu0 0.0
    %98 = vmatpush1.msra.mxu0 0.0
    %99 = vmatprep.subr.mxu0 0.0
    %100 = vmatpush1.msra.mxu0 0.0
    %101 = vmatprep.subr.mxu0 0.0
    %102 = vmatpush1.msra.mxu0 0.0
    %103 = vmatprep.subr.mxu0 0.0
    %104 = vmatpush1.msra.mxu0 0.0
    %105 = vmatprep.subr.mxu0 0.0
    %106 = vmatpush1.msra.mxu0 0.0
    %107 = vmatprep.subr.mxu0 0.0
    %108 = vmatpush1.msra.mxu0 0.0
    %109 = vmatprep.subr.mxu0 0.0
    %110 = vmatpush1.msra.mxu0 0.0
    %111 = vmatprep.subr.mxu0 0.0
    %112 = vmatpush1.msra.mxu0 0.0
    %113 = vmatprep.subr.mxu0 0.0
    %114 = vmatpush1.msra.mxu0 0.0
    %115 = vmatprep.subr.mxu0 0.0
    %116 = vmatpush1.msra.mxu0 0.0
    %117 = vmatprep.subr.mxu0 0.0
    %118 = vmatpush1.msra.mxu0 0.0
    %119 = vmatprep.subr.mxu0 0.0
    %120 = vmatpush1.msra.mxu0 0.0
    %121 = vmatprep.subr.mxu0 0.0
    %122 = vmatpush1.msra.mxu0 0.0
    %123 = vmatprep.subr.mxu0 0.0
    %124 = vmatpush1.msra.mxu0 0.0
    %125 = vmatprep.subr.mxu0 0.0
    %126 = vmatpush1.msra.mxu0 0.0
    %127 = vmatprep.subr.mxu0 0.0
    %128 = vmatpush1.msra.mxu0 0.0
    %129 = vmatprep.subr.mxu0 0.0
    %130 = vmatpush1.msra.mxu0 0.0
    %131 = vmatprep.subr.mxu0 0.0
    %132 = vmatpush1.msra.mxu0 0.0
    %133 = vmatprep.subr.mxu0 0.0
    %134 = vmatpush1.msra.mxu0 0.0
    %135 = vmatprep.subr.mxu0 0.0
    %136 = vmatpush1.msra.mxu0 0.0
    %137 = vmatprep.mubr.f32.mxu0 0.0
    %138 = vmatmul.mubr.f32.gmra.mrb[0].mxu0 %v71
    %v139 = vpop.f32.mrb[0].mxu0
    %v140 = vadd.f32 0.0, %v139
    %v141 = vpop.f32.mrb[0].mxu0
    %142 = vdwg.mxu0
    %v143 = vadd.f32 %v68, %v140
    %v144 = vmul.f32 %v143, %v66
    %v145 = vtanh.pop %v144
    %v146 = vmul.f32 %v145, %v66
    %v147 = vadd.f32 %v146, %v67
    %v148 = vmul.f32 %v147, 0.0
    %150 = vrot.lane.b32.xlu0 %v147, 96
    %v151 = vpop.permute.xlu0 %150
    %v153 = vmul.f32 %v147, %v151
    %155 = vrot.lane.b32.xlu0 %v153, 16
    %v156 = vpop.permute.xlu0 %155
    %v158 = vadd.f32 %v148, %v156
    %v159 = vtanh.pop %v158
    %161 = vrot.lane.b32.xlu0 %v159, 32
    %v162 = vpop.permute.xlu0 %161
    %v164 = vmul.f32 %v147, %v162
    %s165 = scalar_lea.vmem [#allocation2], 8
    %v166 = vld [vmem:[%s165] sm:$0xff]
    %168 = vrot.lane.b32.xlu0 %v164, 80
    %v169 = vpop.permute.xlu0 %168
    %v170 = vsel %vm69, %v169, 0
    %172 = vmatprep.subr.mxu0 0.0
    %173 = vmatpush1.msra.mxu0 %v59
    %174 = vmatprep.subr.mxu0 0.0
    %175 = vmatpush1.msra.mxu0 %v60
    %176 = vmatprep.subr.mxu0 0.0
    %177 = vmatpush1.msra.mxu0 0.0
    %178 = vmatprep.subr.mxu0 0.0
    %179 = vmatpush1.msra.mxu0 0.0
    %180 = vmatprep.subr.mxu0 0.0
    %181 = vmatpush1.msra.mxu0 0.0
    %182 = vmatprep.subr.mxu0 0.0
    %183 = vmatpush1.msra.mxu0 0.0
    %184 = vmatprep.subr.mxu0 0.0
    %185 = vmatpush1.msra.mxu0 0.0
    %186 = vmatprep.subr.mxu0 0.0
    %187 = vmatpush1.msra.mxu0 0.0
    %188 = vmatprep.subr.mxu0 0.0
    %189 = vmatpush1.msra.mxu0 0.0
    %190 = vmatprep.subr.mxu0 0.0
    %191 = vmatpush1.msra.mxu0 0.0
    %192 = vmatprep.subr.mxu0 0.0
    %193 = vmatpush1.msra.mxu0 0.0
    %194 = vmatprep.subr.mxu0 0.0
    %195 = vmatpush1.msra.mxu0 0.0
    %196 = vmatprep.subr.mxu0 0.0
    %197 = vmatpush1.msra.mxu0 0.0
    %198 = vmatprep.subr.mxu0 0.0
    %199 = vmatpush1.msra.mxu0 0.0
    %200 = vmatprep.subr.mxu0 0.0
    %201 = vmatpush1.msra.mxu0 0.0
    %202 = vmatprep.subr.mxu0 0.0
    %203 = vmatpush1.msra.mxu0 0.0
    %204 = vmatprep.subr.mxu0 0.0
    %205 = vmatpush1.msra.mxu0 0.0
    %206 = vmatprep.subr.mxu0 0.0
    %207 = vmatpush1.msra.mxu0 0.0
    %208 = vmatprep.subr.mxu0 0.0
    %209 = vmatpush1.msra.mxu0 0.0
    %210 = vmatprep.subr.mxu0 0.0
    %211 = vmatpush1.msra.mxu0 0.0
    %212 = vmatprep.subr.mxu0 0.0
    %213 = vmatpush1.msra.mxu0 0.0
    %214 = vmatprep.subr.mxu0 0.0
    %215 = vmatpush1.msra.mxu0 0.0
    %216 = vmatprep.subr.mxu0 0.0
    %217 = vmatpush1.msra.mxu0 0.0
    %218 = vmatprep.subr.mxu0 0.0
    %219 = vmatpush1.msra.mxu0 0.0
    %220 = vmatprep.subr.mxu0 0.0
    %221 = vmatpush1.msra.mxu0 0.0
    %222 = vmatprep.subr.mxu0 0.0
    %223 = vmatpush1.msra.mxu0 0.0
    %224 = vmatprep.subr.mxu0 0.0
    %225 = vmatpush1.msra.mxu0 0.0
    %226 = vmatprep.subr.mxu0 0.0
    %227 = vmatpush1.msra.mxu0 0.0
    %228 = vmatprep.subr.mxu0 0.0
    %229 = vmatpush1.msra.mxu0 0.0
    %230 = vmatprep.subr.mxu0 0.0
    %231 = vmatpush1.msra.mxu0 0.0
    %232 = vmatprep.subr.mxu0 0.0
    %233 = vmatpush1.msra.mxu0 0.0
    %234 = vmatprep.subr.mxu0 0.0
    %235 = vmatpush1.msra.mxu0 0.0
    %236 = vmatprep.mubr.f32.mxu0 0.0
    %237 = vmatmul.mubr.f32.gmra.mrb[0].mxu0 %v170
    %v238 = vpop.f32.mrb[0].mxu0
    %v239 = vadd.f32 0.0, %v238
    %v240 = vpop.f32.mrb[0].mxu0
    %241 = vdwg.mxu0
    %v242 = vadd.f32 %v166, %v239
    %v243 = vmul.f32 %v242, %v66
    %v244 = vtanh.pop %v243
    %v245 = vmul.f32 %v244, %v66
    %v246 = vadd.f32 %v245, %v67
    %v247 = vmul.f32 %v246, %v158
    %249 = vrot.lane.b32.xlu0 %v246, 96
    %v250 = vpop.permute.xlu0 %249
    %v252 = vmul.f32 %v246, %v250
    %254 = vrot.lane.b32.xlu0 %v252, 16
    %v255 = vpop.permute.xlu0 %254
    %v257 = vadd.f32 %v247, %v255
    %v258 = vtanh.pop %v257
    %260 = vrot.lane.b32.xlu0 %v258, 32
    %v261 = vpop.permute.xlu0 %260
    %v263 = vmul.f32 %v246, %v261
    %s264 = scalar_lea.vmem [#allocation2], 16
    %v265 = vld [vmem:[%s264] sm:$0xff]
    %267 = vrot.lane.b32.xlu0 %v263, 80
    %v268 = vpop.permute.xlu0 %267
    %v269 = vsel %vm69, %v268, 0
    %271 = vmatprep.subr.mxu0 0.0
    %272 = vmatpush1.msra.mxu0 %v59
    %273 = vmatprep.subr.mxu0 0.0
    %274 = vmatpush1.msra.mxu0 %v60
    %275 = vmatprep.subr.mxu0 0.0
    %276 = vmatpush1.msra.mxu0 0.0
    %277 = vmatprep.subr.mxu0 0.0
    %278 = vmatpush1.msra.mxu0 0.0
    %279 = vmatprep.subr.mxu0 0.0
    %280 = vmatpush1.msra.mxu0 0.0
    %281 = vmatprep.subr.mxu0 0.0
    %282 = vmatpush1.msra.mxu0 0.0
    %283 = vmatprep.subr.mxu0 0.0
    %284 = vmatpush1.msra.mxu0 0.0
    %285 = vmatprep.subr.mxu0 0.0
    %286 = vmatpush1.msra.mxu0 0.0
    %287 = vmatprep.subr.mxu0 0.0
    %288 = vmatpush1.msra.mxu0 0.0
    %289 = vmatprep.subr.mxu0 0.0
    %290 = vmatpush1.msra.mxu0 0.0
    %291 = vmatprep.subr.mxu0 0.0
    %292 = vmatpush1.msra.mxu0 0.0
    %293 = vmatprep.subr.mxu0 0.0
    %294 = vmatpush1.msra.mxu0 0.0
    %295 = vmatprep.subr.mxu0 0.0
    %296 = vmatpush1.msra.mxu0 0.0
    %297 = vmatprep.subr.mxu0 0.0
    %298 = vmatpush1.msra.mxu0 0.0
    %299 = vmatprep.subr.mxu0 0.0
    %300 = vmatpush1.msra.mxu0 0.0
    %301 = vmatprep.subr.mxu0 0.0
    %302 = vmatpush1.msra.mxu0 0.0
    %303 = vmatprep.subr.mxu0 0.0
    %304 = vmatpush1.msra.mxu0 0.0
    %305 = vmatprep.subr.mxu0 0.0
    %306 = vmatpush1.msra.mxu0 0.0
    %307 = vmatprep.subr.mxu0 0.0
    %308 = vmatpush1.msra.mxu0 0.0
    %309 = vmatprep.subr.mxu0 0.0
    %310 = vmatpush1.msra.mxu0 0.0
    %311 = vmatprep.subr.mxu0 0.0
    %312 = vmatpush1.msra.mxu0 0.0
    %313 = vmatprep.subr.mxu0 0.0
    %314 = vmatpush1.msra.mxu0 0.0
    %315 = vmatprep.subr.mxu0 0.0
    %316 = vmatpush1.msra.mxu0 0.0
    %317 = vmatprep.subr.mxu0 0.0
    %318 = vmatpush1.msra.mxu0 0.0
    %319 = vmatprep.subr.mxu0 0.0
    %320 = vmatpush1.msra.mxu0 0.0
    %321 = vmatprep.subr.mxu0 0.0
    %322 = vmatpush1.msra.mxu0 0.0
    %323 = vmatprep.subr.mxu0 0.0
    %324 = vmatpush1.msra.mxu0 0.0
    %325 = vmatprep.subr.mxu0 0.0
    %326 = vmatpush1.msra.mxu0 0.0
    %327 = vmatprep.subr.mxu0 0.0
    %328 = vmatpush1.msra.mxu0 0.0
    %329 = vmatprep.subr.mxu0 0.0
    %330 = vmatpush1.msra.mxu0 0.0
    %331 = vmatprep.subr.mxu0 0.0
    %332 = vmatpush1.msra.mxu0 0.0
    %333 = vmatprep.subr.mxu0 0.0
    %334 = vmatpush1.msra.mxu0 0.0
    %335 = vmatprep.mubr.f32.mxu0 0.0
    %336 = vmatmul.mubr.f32.gmra.mrb[0].mxu0 %v269
    %v337 = vpop.f32.mrb[0].mxu0
    %v338 = vadd.f32 0.0, %v337
    %v339 = vpop.f32.mrb[0].mxu0
    %340 = vdwg.mxu0
    %v341 = vadd.f32 %v265, %v338
    %v342 = vmul.f32 %v341, %v66
    %v343 = vtanh.pop %v342
    %v344 = vmul.f32 %v343, %v66
    %v345 = vadd.f32 %v344, %v67
    %v346 = vmul.f32 %v345, %v257
    %348 = vrot.lane.b32.xlu0 %v345, 96
    %v349 = vpop.permute.xlu0 %348
    %v351 = vmul.f32 %v345, %v349
    %353 = vrot.lane.b32.xlu0 %v351, 16
    %v354 = vpop.permute.xlu0 %353
    %v356 = vadd.f32 %v346, %v354
    %v357 = vtanh.pop %v356
    %359 = vrot.lane.b32.xlu0 %v357, 32
    %v360 = vpop.permute.xlu0 %359
    %v362 = vmul.f32 %v345, %v360
    %s363 = scalar_lea.vmem [#allocation2], 24
    %v364 = vld [vmem:[%s363] sm:$0xff]
    %366 = vrot.lane.b32.xlu0 %v362, 80
    %v367 = vpop.permute.xlu0 %366
    %v368 = vsel %vm69, %v367, 0
    %370 = vmatprep.subr.mxu0 0.0
    %371 = vmatpush1.msra.mxu0 %v59
    %372 = vmatprep.subr.mxu0 0.0
    %373 = vmatpush1.msra.mxu0 %v60
    %374 = vmatprep.subr.mxu0 0.0
    %375 = vmatpush1.msra.mxu0 0.0
    %376 = vmatprep.subr.mxu0 0.0
    %377 = vmatpush1.msra.mxu0 0.0
    %378 = vmatprep.subr.mxu0 0.0
    %379 = vmatpush1.msra.mxu0 0.0
    %380 = vmatprep.subr.mxu0 0.0
    %381 = vmatpush1.msra.mxu0 0.0
    %382 = vmatprep.subr.mxu0 0.0
    %383 = vmatpush1.msra.mxu0 0.0
    %384 = vmatprep.subr.mxu0 0.0
    %385 = vmatpush1.msra.mxu0 0.0
    %386 = vmatprep.subr.mxu0 0.0
    %387 = vmatpush1.msra.mxu0 0.0
    %388 = vmatprep.subr.mxu0 0.0
    %389 = vmatpush1.msra.mxu0 0.0
    %390 = vmatprep.subr.mxu0 0.0
    %391 = vmatpush1.msra.mxu0 0.0
    %392 = vmatprep.subr.mxu0 0.0
    %393 = vmatpush1.msra.mxu0 0.0
    %394 = vmatprep.subr.mxu0 0.0
    %395 = vmatpush1.msra.mxu0 0.0
    %396 = vmatprep.subr.mxu0 0.0
    %397 = vmatpush1.msra.mxu0 0.0
    %398 = vmatprep.subr.mxu0 0.0
    %399 = vmatpush1.msra.mxu0 0.0
    %400 = vmatprep.subr.mxu0 0.0
    %401 = vmatpush1.msra.mxu0 0.0
    %402 = vmatprep.subr.mxu0 0.0
    %403 = vmatpush1.msra.mxu0 0.0
    %404 = vmatprep.subr.mxu0 0.0
    %405 = vmatpush1.msra.mxu0 0.0
    %406 = vmatprep.subr.mxu0 0.0
    %407 = vmatpush1.msra.mxu0 0.0
    %408 = vmatprep.subr.mxu0 0.0
    %409 = vmatpush1.msra.mxu0 0.0
    %410 = vmatprep.subr.mxu0 0.0
    %411 = vmatpush1.msra.mxu0 0.0
    %412 = vmatprep.subr.mxu0 0.0
    %413 = vmatpush1.msra.mxu0 0.0
    %414 = vmatprep.subr.mxu0 0.0
    %415 = vmatpush1.msra.mxu0 0.0
    %416 = vmatprep.subr.mxu0 0.0
    %417 = vmatpush1.msra.mxu0 0.0
    %418 = vmatprep.subr.mxu0 0.0
    %419 = vmatpush1.msra.mxu0 0.0
    %420 = vmatprep.subr.mxu0 0.0
    %421 = vmatpush1.msra.mxu0 0.0
    %422 = vmatprep.subr.mxu0 0.0
    %423 = vmatpush1.msra.mxu0 0.0
    %424 = vmatprep.subr.mxu0 0.0
    %425 = vmatpush1.msra.mxu0 0.0
    %426 = vmatprep.subr.mxu0 0.0
    %427 = vmatpush1.msra.mxu0 0.0
    %428 = vmatprep.subr.mxu0 0.0
    %429 = vmatpush1.msra.mxu0 0.0
    %430 = vmatprep.subr.mxu0 0.0
    %431 = vmatpush1.msra.mxu0 0.0
    %432 = vmatprep.subr.mxu0 0.0
    %433 = vmatpush1.msra.mxu0 0.0
    %434 = vmatprep.mubr.f32.mxu0 0.0
    %435 = vmatmul.mubr.f32.gmra.mrb[0].mxu0 %v368
    %v436 = vpop.f32.mrb[0].mxu0
    %v437 = vadd.f32 0.0, %v436
    %v438 = vpop.f32.mrb[0].mxu0
    %439 = vdwg.mxu0
    %v440 = vadd.f32 %v364, %v437
    %v441 = vmul.f32 %v440, %v66
    %v442 = vtanh.pop %v441
    %v443 = vmul.f32 %v442, %v66
    %v444 = vadd.f32 %v443, %v67
    %v445 = vmul.f32 %v444, %v356
    %447 = vrot.lane.b32.xlu0 %v444, 96
    %v448 = vpop.permute.xlu0 %447
    %v450 = vmul.f32 %v444, %v448
    %452 = vrot.lane.b32.xlu0 %v450, 16
    %v453 = vpop.permute.xlu0 %452
    %v455 = vadd.f32 %v445, %v453
    %v456 = vtanh.pop %v455
    %458 = vrot.lane.b32.xlu0 %v456, 32
    %v459 = vpop.permute.xlu0 %458
    %v461 = vmul.f32 %v444, %v459
    %s462 = scalar_lea.vmem [#allocation2], 32
    %v463 = vld [vmem:[%s462] sm:$0xff]
    %465 = vrot.lane.b32.xlu0 %v461, 80
    %v466 = vpop.permute.xlu0 %465
    %v467 = vsel %vm69, %v466, 0
    %469 = vmatprep.subr.mxu0 0.0
    %470 = vmatpush1.msra.mxu0 %v59
    %471 = vmatprep.subr.mxu0 0.0
    %472 = vmatpush1.msra.mxu0 %v60
    %473 = vmatprep.subr.mxu0 0.0
    %474 = vmatpush1.msra.mxu0 0.0
    %475 = vmatprep.subr.mxu0 0.0
    %476 = vmatpush1.msra.mxu0 0.0
    %477 = vmatprep.subr.mxu0 0.0
    %478 = vmatpush1.msra.mxu0 0.0
    %479 = vmatprep.subr.mxu0 0.0
    %480 = vmatpush1.msra.mxu0 0.0
    %481 = vmatprep.subr.mxu0 0.0
    %482 = vmatpush1.msra.mxu0 0.0
    %483 = vmatprep.subr.mxu0 0.0
    %484 = vmatpush1.msra.mxu0 0.0
    %485 = vmatprep.subr.mxu0 0.0
    %486 = vmatpush1.msra.mxu0 0.0
    %487 = vmatprep.subr.mxu0 0.0
    %488 = vmatpush1.msra.mxu0 0.0
    %489 = vmatprep.subr.mxu0 0.0
    %490 = vmatpush1.msra.mxu0 0.0
    %491 = vmatprep.subr.mxu0 0.0
    %492 = vmatpush1.msra.mxu0 0.0
    %493 = vmatprep.subr.mxu0 0.0
    %494 = vmatpush1.msra.mxu0 0.0
    %495 = vmatprep.subr.mxu0 0.0
    %496 = vmatpush1.msra.mxu0 0.0
    %497 = vmatprep.subr.mxu0 0.0
    %498 = vmatpush1.msra.mxu0 0.0
    %499 = vmatprep.subr.mxu0 0.0
    %500 = vmatpush1.msra.mxu0 0.0
    %501 = vmatprep.subr.mxu0 0.0
    %502 = vmatpush1.msra.mxu0 0.0
    %503 = vmatprep.subr.mxu0 0.0
    %504 = vmatpush1.msra.mxu0 0.0
    %505 = vmatprep.subr.mxu0 0.0
    %506 = vmatpush1.msra.mxu0 0.0
    %507 = vmatprep.subr.mxu0 0.0
    %508 = vmatpush1.msra.mxu0 0.0
    %509 = vmatprep.subr.mxu0 0.0
    %510 = vmatpush1.msra.mxu0 0.0
    %511 = vmatprep.subr.mxu0 0.0
    %512 = vmatpush1.msra.mxu0 0.0
    %513 = vmatprep.subr.mxu0 0.0
    %514 = vmatpush1.msra.mxu0 0.0
    %515 = vmatprep.subr.mxu0 0.0
    %516 = vmatpush1.msra.mxu0 0.0
    %517 = vmatprep.subr.mxu0 0.0
    %518 = vmatpush1.msra.mxu0 0.0
    %519 = vmatprep.subr.mxu0 0.0
    %520 = vmatpush1.msra.mxu0 0.0
    %521 = vmatprep.subr.mxu0 0.0
    %522 = vmatpush1.msra.mxu0 0.0
    %523 = vmatprep.subr.mxu0 0.0
    %524 = vmatpush1.msra.mxu0 0.0
    %525 = vmatprep.subr.mxu0 0.0
    %526 = vmatpush1.msra.mxu0 0.0
    %527 = vmatprep.subr.mxu0 0.0
    %528 = vmatpush1.msra.mxu0 0.0
    %529 = vmatprep.subr.mxu0 0.0
    %530 = vmatpush1.msra.mxu0 0.0
    %531 = vmatprep.subr.mxu0 0.0
    %532 = vmatpush1.msra.mxu0 0.0
    %533 = vmatprep.mubr.f32.mxu0 0.0
    %534 = vmatmul.mubr.f32.gmra.mrb[0].mxu0 %v467
    %v535 = vpop.f32.mrb[0].mxu0
    %v536 = vadd.f32 0.0, %v535
    %v537 = vpop.f32.mrb[0].mxu0
    %538 = vdwg.mxu0
    %v539 = vadd.f32 %v463, %v536
    %v540 = vmul.f32 %v539, %v66
    %v541 = vtanh.pop %v540
    %v542 = vmul.f32 %v541, %v66
    %v543 = vadd.f32 %v542, %v67
    %v544 = vmul.f32 %v543, %v455
    %546 = vrot.lane.b32.xlu0 %v543, 96
    %v547 = vpop.permute.xlu0 %546
    %v549 = vmul.f32 %v543, %v547
    %551 = vrot.lane.b32.xlu0 %v549, 16
    %v552 = vpop.permute.xlu0 %551
    %v554 = vadd.f32 %v544, %v552
    %v555 = vtanh.pop %v554
    %557 = vrot.lane.b32.xlu0 %v555, 32
    %v558 = vpop.permute.xlu0 %557
    %v560 = vmul.f32 %v543, %v558
    %s561 = scalar_lea.vmem [#allocation2], 40
    %v562 = vld [vmem:[%s561] sm:$0xff]
    %564 = vrot.lane.b32.xlu0 %v560, 80
    %v565 = vpop.permute.xlu0 %564
    %v566 = vsel %vm69, %v565, 0
    %568 = vmatprep.subr.mxu0 0.0
    %569 = vmatpush1.msra.mxu0 %v59
    %570 = vmatprep.subr.mxu0 0.0
    %571 = vmatpush1.msra.mxu0 %v60
    %572 = vmatprep.subr.mxu0 0.0
    %573 = vmatpush1.msra.mxu0 0.0
    %574 = vmatprep.subr.mxu0 0.0
    %575 = vmatpush1.msra.mxu0 0.0
    %576 = vmatprep.subr.mxu0 0.0
    %577 = vmatpush1.msra.mxu0 0.0
    %578 = vmatprep.subr.mxu0 0.0
    %579 = vmatpush1.msra.mxu0 0.0
    %580 = vmatprep.subr.mxu0 0.0
    %581 = vmatpush1.msra.mxu0 0.0
    %582 = vmatprep.subr.mxu0 0.0
    %583 = vmatpush1.msra.mxu0 0.0
    %584 = vmatprep.subr.mxu0 0.0
    %585 = vmatpush1.msra.mxu0 0.0
    %586 = vmatprep.subr.mxu0 0.0
    %587 = vmatpush1.msra.mxu0 0.0
    %588 = vmatprep.subr.mxu0 0.0
    %589 = vmatpush1.msra.mxu0 0.0
    %590 = vmatprep.subr.mxu0 0.0
    %591 = vmatpush1.msra.mxu0 0.0
    %592 = vmatprep.subr.mxu0 0.0
    %593 = vmatpush1.msra.mxu0 0.0
    %594 = vmatprep.subr.mxu0 0.0
    %595 = vmatpush1.msra.mxu0 0.0
    %596 = vmatprep.subr.mxu0 0.0
    %597 = vmatpush1.msra.mxu0 0.0
    %598 = vmatprep.subr.mxu0 0.0
    %599 = vmatpush1.msra.mxu0 0.0
    %600 = vmatprep.subr.mxu0 0.0
    %601 = vmatpush1.msra.mxu0 0.0
    %602 = vmatprep.subr.mxu0 0.0
    %603 = vmatpush1.msra.mxu0 0.0
    %604 = vmatprep.subr.mxu0 0.0
    %605 = vmatpush1.msra.mxu0 0.0
    %606 = vmatprep.subr.mxu0 0.0
    %607 = vmatpush1.msra.mxu0 0.0
    %608 = vmatprep.subr.mxu0 0.0
    %609 = vmatpush1.msra.mxu0 0.0
    %610 = vmatprep.subr.mxu0 0.0
    %611 = vmatpush1.msra.mxu0 0.0
    %612 = vmatprep.subr.mxu0 0.0
    %613 = vmatpush1.msra.mxu0 0.0
    %614 = vmatprep.subr.mxu0 0.0
    %615 = vmatpush1.msra.mxu0 0.0
    %616 = vmatprep.subr.mxu0 0.0
    %617 = vmatpush1.msra.mxu0 0.0
    %618 = vmatprep.subr.mxu0 0.0
    %619 = vmatpush1.msra.mxu0 0.0
    %620 = vmatprep.subr.mxu0 0.0
    %621 = vmatpush1.msra.mxu0 0.0
    %622 = vmatprep.subr.mxu0 0.0
    %623 = vmatpush1.msra.mxu0 0.0
    %624 = vmatprep.subr.mxu0 0.0
    %625 = vmatpush1.msra.mxu0 0.0
    %626 = vmatprep.subr.mxu0 0.0
    %627 = vmatpush1.msra.mxu0 0.0
    %628 = vmatprep.subr.mxu0 0.0
    %629 = vmatpush1.msra.mxu0 0.0
    %630 = vmatprep.subr.mxu0 0.0
    %631 = vmatpush1.msra.mxu0 0.0
    %632 = vmatprep.mubr.f32.mxu0 0.0
    %633 = vmatmul.mubr.f32.gmra.mrb[0].mxu0 %v566
    %v634 = vpop.f32.mrb[0].mxu0
    %v635 = vadd.f32 0.0, %v634
    %v636 = vpop.f32.mrb[0].mxu0
    %637 = vdwg.mxu0
    %v638 = vadd.f32 %v562, %v635
    %v639 = vmul.f32 %v638, %v66
    %v640 = vtanh.pop %v639
    %v641 = vmul.f32 %v640, %v66
    %v642 = vadd.f32 %v641, %v67
    %v643 = vmul.f32 %v642, %v554
    %645 = vrot.lane.b32.xlu0 %v642, 96
    %v646 = vpop.permute.xlu0 %645
    %v648 = vmul.f32 %v642, %v646
    %650 = vrot.lane.b32.xlu0 %v648, 16
    %v651 = vpop.permute.xlu0 %650
    %v653 = vadd.f32 %v643, %v651
    %v654 = vtanh.pop %v653
    %656 = vrot.lane.b32.xlu0 %v654, 32
    %v657 = vpop.permute.xlu0 %656
    %v659 = vmul.f32 %v642, %v657
    %s660 = scalar_lea.vmem [#allocation2], 48
    %v661 = vld [vmem:[%s660] sm:$0xff]
    %663 = vrot.lane.b32.xlu0 %v659, 80
    %v664 = vpop.permute.xlu0 %663
    %v665 = vsel %vm69, %v664, 0
    %667 = vmatprep.subr.mxu0 0.0
    %668 = vmatpush1.msra.mxu0 %v59
    %669 = vmatprep.subr.mxu0 0.0
    %670 = vmatpush1.msra.mxu0 %v60
    %671 = vmatprep.subr.mxu0 0.0
    %672 = vmatpush1.msra.mxu0 0.0
    %673 = vmatprep.subr.mxu0 0.0
    %674 = vmatpush1.msra.mxu0 0.0
    %675 = vmatprep.subr.mxu0 0.0
    %676 = vmatpush1.msra.mxu0 0.0
    %677 = vmatprep.subr.mxu0 0.0
    %678 = vmatpush1.msra.mxu0 0.0
    %679 = vmatprep.subr.mxu0 0.0
    %680 = vmatpush1.msra.mxu0 0.0
    %681 = vmatprep.subr.mxu0 0.0
    %682 = vmatpush1.msra.mxu0 0.0
    %683 = vmatprep.subr.mxu0 0.0
    %684 = vmatpush1.msra.mxu0 0.0
    %685 = vmatprep.subr.mxu0 0.0
    %686 = vmatpush1.msra.mxu0 0.0
    %687 = vmatprep.subr.mxu0 0.0
    %688 = vmatpush1.msra.mxu0 0.0
    %689 = vmatprep.subr.mxu0 0.0
    %690 = vmatpush1.msra.mxu0 0.0
    %691 = vmatprep.subr.mxu0 0.0
    %692 = vmatpush1.msra.mxu0 0.0
    %693 = vmatprep.subr.mxu0 0.0
    %694 = vmatpush1.msra.mxu0 0.0
    %695 = vmatprep.subr.mxu0 0.0
    %696 = vmatpush1.msra.mxu0 0.0
    %697 = vmatprep.subr.mxu0 0.0
    %698 = vmatpush1.msra.mxu0 0.0
    %699 = vmatprep.subr.mxu0 0.0
    %700 = vmatpush1.msra.mxu0 0.0
    %701 = vmatprep.subr.mxu0 0.0
    %702 = vmatpush1.msra.mxu0 0.0
    %703 = vmatprep.subr.mxu0 0.0
    %704 = vmatpush1.msra.mxu0 0.0
    %705 = vmatprep.subr.mxu0 0.0
    %706 = vmatpush1.msra.mxu0 0.0
    %707 = vmatprep.subr.mxu0 0.0
    %708 = vmatpush1.msra.mxu0 0.0
    %709 = vmatprep.subr.mxu0 0.0
    %710 = vmatpush1.msra.mxu0 0.0
    %711 = vmatprep.subr.mxu0 0.0
    %712 = vmatpush1.msra.mxu0 0.0
    %713 = vmatprep.subr.mxu0 0.0
    %714 = vmatpush1.msra.mxu0 0.0
    %715 = vmatprep.subr.mxu0 0.0
    %716 = vmatpush1.msra.mxu0 0.0
    %717 = vmatprep.subr.mxu0 0.0
    %718 = vmatpush1.msra.mxu0 0.0
    %719 = vmatprep.subr.mxu0 0.0
    %720 = vmatpush1.msra.mxu0 0.0
    %721 = vmatprep.subr.mxu0 0.0
    %722 = vmatpush1.msra.mxu0 0.0
    %723 = vmatprep.subr.mxu0 0.0
    %724 = vmatpush1.msra.mxu0 0.0
    %725 = vmatprep.subr.mxu0 0.0
    %726 = vmatpush1.msra.mxu0 0.0
    %727 = vmatprep.subr.mxu0 0.0
    %728 = vmatpush1.msra.mxu0 0.0
    %729 = vmatprep.subr.mxu0 0.0
    %730 = vmatpush1.msra.mxu0 0.0
    %731 = vmatprep.mubr.f32.mxu0 0.0
    %732 = vmatmul.mubr.f32.gmra.mrb[0].mxu0 %v665
    %v733 = vpop.f32.mrb[0].mxu0
    %v734 = vadd.f32 0.0, %v733
    %v735 = vpop.f32.mrb[0].mxu0
    %736 = vdwg.mxu0
    %v737 = vadd.f32 %v661, %v734
    %v738 = vmul.f32 %v737, %v66
    %v739 = vtanh.pop %v738
    %v740 = vmul.f32 %v739, %v66
    %v741 = vadd.f32 %v740, %v67
    %v742 = vmul.f32 %v741, %v653
    %744 = vrot.lane.b32.xlu0 %v741, 96
    %v745 = vpop.permute.xlu0 %744
    %v747 = vmul.f32 %v741, %v745
    %749 = vrot.lane.b32.xlu0 %v747, 16
    %v750 = vpop.permute.xlu0 %749
    %v752 = vadd.f32 %v742, %v750
    %v753 = vtanh.pop %v752
    %755 = vrot.lane.b32.xlu0 %v753, 32
    %v756 = vpop.permute.xlu0 %755
    %v758 = vmul.f32 %v741, %v756
    %s759 = scalar_lea.vmem [#allocation2], 56
    %v760 = vld [vmem:[%s759] sm:$0xff]
    %762 = vrot.lane.b32.xlu0 %v758, 80
    %v763 = vpop.permute.xlu0 %762
    %v764 = vsel %vm69, %v763, 0
    %766 = vmatprep.subr.mxu0 0.0
    %767 = vmatpush1.msra.mxu0 %v59
    %768 = vmatprep.subr.mxu0 0.0
    %769 = vmatpush1.msra.mxu0 %v60
    %770 = vmatprep.subr.mxu0 0.0
    %771 = vmatpush1.msra.mxu0 0.0
    %772 = vmatprep.subr.mxu0 0.0
    %773 = vmatpush1.msra.mxu0 0.0
    %774 = vmatprep.subr.mxu0 0.0
    %775 = vmatpush1.msra.mxu0 0.0
    %776 = vmatprep.subr.mxu0 0.0
    %777 = vmatpush1.msra.mxu0 0.0
    %778 = vmatprep.subr.mxu0 0.0
    %779 = vmatpush1.msra.mxu0 0.0
    %780 = vmatprep.subr.mxu0 0.0
    %781 = vmatpush1.msra.mxu0 0.0
    %782 = vmatprep.subr.mxu0 0.0
    %783 = vmatpush1.msra.mxu0 0.0
    %784 = vmatprep.subr.mxu0 0.0
    %785 = vmatpush1.msra.mxu0 0.0
    %786 = vmatprep.subr.mxu0 0.0
    %787 = vmatpush1.msra.mxu0 0.0
    %788 = vmatprep.subr.mxu0 0.0
    %789 = vmatpush1.msra.mxu0 0.0
    %790 = vmatprep.subr.mxu0 0.0
    %791 = vmatpush1.msra.mxu0 0.0
    %792 = vmatprep.subr.mxu0 0.0
    %793 = vmatpush1.msra.mxu0 0.0
    %794 = vmatprep.subr.mxu0 0.0
    %795 = vmatpush1.msra.mxu0 0.0
    %796 = vmatprep.subr.mxu0 0.0
    %797 = vmatpush1.msra.mxu0 0.0
    %798 = vmatprep.subr.mxu0 0.0
    %799 = vmatpush1.msra.mxu0 0.0
    %800 = vmatprep.subr.mxu0 0.0
    %801 = vmatpush1.msra.mxu0 0.0
    %802 = vmatprep.subr.mxu0 0.0
    %803 = vmatpush1.msra.mxu0 0.0
    %804 = vmatprep.subr.mxu0 0.0
    %805 = vmatpush1.msra.mxu0 0.0
    %806 = vmatprep.subr.mxu0 0.0
    %807 = vmatpush1.msra.mxu0 0.0
    %808 = vmatprep.subr.mxu0 0.0
    %809 = vmatpush1.msra.mxu0 0.0
    %810 = vmatprep.subr.mxu0 0.0
    %811 = vmatpush1.msra.mxu0 0.0
    %812 = vmatprep.subr.mxu0 0.0
    %813 = vmatpush1.msra.mxu0 0.0
    %814 = vmatprep.subr.mxu0 0.0
    %815 = vmatpush1.msra.mxu0 0.0
    %816 = vmatprep.subr.mxu0 0.0
    %817 = vmatpush1.msra.mxu0 0.0
    %818 = vmatprep.subr.mxu0 0.0
    %819 = vmatpush1.msra.mxu0 0.0
    %820 = vmatprep.subr.mxu0 0.0
    %821 = vmatpush1.msra.mxu0 0.0
    %822 = vmatprep.subr.mxu0 0.0
    %823 = vmatpush1.msra.mxu0 0.0
    %824 = vmatprep.subr.mxu0 0.0
    %825 = vmatpush1.msra.mxu0 0.0
    %826 = vmatprep.subr.mxu0 0.0
    %827 = vmatpush1.msra.mxu0 0.0
    %828 = vmatprep.subr.mxu0 0.0
    %829 = vmatpush1.msra.mxu0 0.0
    %830 = vmatprep.mubr.f32.mxu0 0.0
    %831 = vmatmul.mubr.f32.gmra.mrb[0].mxu0 %v764
    %v832 = vpop.f32.mrb[0].mxu0
    %v833 = vadd.f32 0.0, %v832
    %v834 = vpop.f32.mrb[0].mxu0
    %835 = vdwg.mxu0
    %v836 = vadd.f32 %v760, %v833
    %v837 = vmul.f32 %v836, %v66
    %v838 = vtanh.pop %v837
    %v839 = vmul.f32 %v838, %v66
    %v840 = vadd.f32 %v839, %v67
    %v841 = vmul.f32 %v840, %v752
    %843 = vrot.lane.b32.xlu0 %v840, 96
    %v844 = vpop.permute.xlu0 %843
    %v846 = vmul.f32 %v840, %v844
    %848 = vrot.lane.b32.xlu0 %v846, 16
    %v849 = vpop.permute.xlu0 %848
    %v851 = vadd.f32 %v841, %v849
    %v852 = vtanh.pop %v851
    %854 = vrot.lane.b32.xlu0 %v852, 32
    %v855 = vpop.permute.xlu0 %854
    %v857 = vmul.f32 %v840, %v855
    %v858 = vld [vmem:[#allocation7] sm:$0xff]
    %v859 = vld [vmem:[#allocation7 + $0x8] sm:$0xff]
    %v860 = vld [vmem:[%s3] sm:$0x1]
    %v862 = vlaneseq
    %v863 = vshrl.u32 %v862, 7
    %v864 = vsub.s32 0, %v863
    %v865 = vrot.slane %v860, %v864
    %868 = vrot.lane.b32.xlu0 %v857, 80
    %v869 = vpop.permute.xlu0 %868
    %v870 = vsel %vm69, %v869, 0
    %872 = vmatprep.subr.mxu0 0.0
    %873 = vmatpush1.msra.mxu0 %v858
    %874 = vmatprep.subr.mxu0 0.0
    %875 = vmatpush1.msra.mxu0 %v859
    %876 = vmatprep.subr.mxu0 0.0
    %877 = vmatpush1.msra.mxu0 0.0
    %878 = vmatprep.subr.mxu0 0.0
    %879 = vmatpush1.msra.mxu0 0.0
    %880 = vmatprep.subr.mxu0 0.0
    %881 = vmatpush1.msra.mxu0 0.0
    %882 = vmatprep.subr.mxu0 0.0
    %883 = vmatpush1.msra.mxu0 0.0
    %884 = vmatprep.subr.mxu0 0.0
    %885 = vmatpush1.msra.mxu0 0.0
    %886 = vmatprep.subr.mxu0 0.0
    %887 = vmatpush1.msra.mxu0 0.0
    %888 = vmatprep.subr.mxu0 0.0
    %889 = vmatpush1.msra.mxu0 0.0
    %890 = vmatprep.subr.mxu0 0.0
    %891 = vmatpush1.msra.mxu0 0.0
    %892 = vmatprep.subr.mxu0 0.0
    %893 = vmatpush1.msra.mxu0 0.0
    %894 = vmatprep.subr.mxu0 0.0
    %895 = vmatpush1.msra.mxu0 0.0
    %896 = vmatprep.subr.mxu0 0.0
    %897 = vmatpush1.msra.mxu0 0.0
    %898 = vmatprep.subr.mxu0 0.0
    %899 = vmatpush1.msra.mxu0 0.0
    %900 = vmatprep.subr.mxu0 0.0
    %901 = vmatpush1.msra.mxu0 0.0
    %902 = vmatprep.subr.mxu0 0.0
    %903 = vmatpush1.msra.mxu0 0.0
    %904 = vmatprep.subr.mxu0 0.0
    %905 = vmatpush1.msra.mxu0 0.0
    %906 = vmatprep.subr.mxu0 0.0
    %907 = vmatpush1.msra.mxu0 0.0
    %908 = vmatprep.subr.mxu0 0.0
    %909 = vmatpush1.msra.mxu0 0.0
    %910 = vmatprep.subr.mxu0 0.0
    %911 = vmatpush1.msra.mxu0 0.0
    %912 = vmatprep.subr.mxu0 0.0
    %913 = vmatpush1.msra.mxu0 0.0
    %914 = vmatprep.subr.mxu0 0.0
    %915 = vmatpush1.msra.mxu0 0.0
    %916 = vmatprep.subr.mxu0 0.0
    %917 = vmatpush1.msra.mxu0 0.0
    %918 = vmatprep.subr.mxu0 0.0
    %919 = vmatpush1.msra.mxu0 0.0
    %920 = vmatprep.subr.mxu0 0.0
    %921 = vmatpush1.msra.mxu0 0.0
    %922 = vmatprep.subr.mxu0 0.0
    %923 = vmatpush1.msra.mxu0 0.0
    %924 = vmatprep.subr.mxu0 0.0
    %925 = vmatpush1.msra.mxu0 0.0
    %926 = vmatprep.subr.mxu0 0.0
    %927 = vmatpush1.msra.mxu0 0.0
    %928 = vmatprep.subr.mxu0 0.0
    %929 = vmatpush1.msra.mxu0 0.0
    %930 = vmatprep.subr.mxu0 0.0
    %931 = vmatpush1.msra.mxu0 0.0
    %932 = vmatprep.subr.mxu0 0.0
    %933 = vmatpush1.msra.mxu0 0.0
    %934 = vmatprep.subr.mxu0 0.0
    %935 = vmatpush1.msra.mxu0 0.0
    %936 = vmatprep.mubr.f32.mxu0 0.0
    %937 = vmatmul.mubr.f32.gmra.mrb[0].mxu0 %v870
    %v938 = vpop.f32.mrb[0].mxu0
    %v939 = vadd.f32 %v865, %v938
    %v940 = vpop.f32.mrb[0].mxu0
    %941 = vdwg.mxu0
    %942 = vst [vmem:[#allocation8] sm:$0xff] %v939
    // Predicated region
    $region30: #{tpu_custom_call.1} parent=1 // pred_check
      _
    $region31: #{tpu_custom_call.1} parent=1 // pred_check_branch
      %944 = sbr.rel (0) target = $region33
    $region32: #{tpu_custom_call.1} parent=1 // pred_region
      %s946 = ssub.s32 128, 128
      %947 = vsyncadd [#allocation4], %s946
      %s949 = sshll.u32 [#allocation8], 4
      %s950 = int_to_ptr.vmem [resolvable:$true] %s949
      %952 = dma.vmem_to_hbm [thread:$0]  %s950, 128, %s4, [#allocation4]
    $region33: #{tpu_custom_call.1} parent=1 // pred_fallthru
      _
    // Predicated region
    $region34: #{tpu_custom_call.1} parent=1 // pred_check
      _
    $region35: #{tpu_custom_call.1} parent=1 // pred_check_branch
      %954 = sbr.rel (0) target = $region37
    $region36: #{tpu_custom_call.1} parent=1 // pred_region
      %955 = dma.done [#allocation4], 128
    $region37: #{tpu_custom_call.1} parent=1 // pred_fallthru
      _
    %956 = vsyncpa [#allocation3], 1
    %957 = vsyncpa [#allocation6], 1
    %958 = vsyncpa [#allocation4], 1

</llo_original>
